<compile_context>
chip_gen: v5e
topology: v5e:2x2
jax: 0.10.0
libtpu: 0.0.40
codegen_flags: <defaults>
</compile_context>

<pallas_src>
import functools

import jax
import jax.numpy as jnp
from jax.experimental import pallas as pl
from jax.experimental.pallas import tpu as pltpu

LANE = 128  # every feature width is padded to this many lanes


def _fused_sage_kernel(a_ref, x_ref, wn_ref, wr_ref, b_ref, o_ref,
                       h_buf, xwn_buf, xwr_buf, *, tm, num_classes, num_layers):
    l = pl.program_id(0)  # layer index (outer, sequential)
    t = pl.program_id(1)  # node-row tile index (inner)

    # Load padded bf16 input features into the shared activation buffer once.
    @pl.when(jnp.logical_and(l == 0, t == 0))
    def _():
        h_buf[...] = x_ref[...]

    # Once per layer: whole-graph feature transforms (bias hoisted here).
    #   xwn = H @ W_neigh          (bf16 -> feeds the aggregation matmul)
    #   xwr = H @ W_root + b       (f32 root/self term)
    @pl.when(t == 0)
    def _():
        h = h_buf[...]
        xwn = jnp.dot(h, wn_ref[...], preferred_element_type=jnp.float32)
        xwr = jnp.dot(h, wr_ref[...], preferred_element_type=jnp.float32)
        xwn_buf[...] = xwn.astype(xwn_buf.dtype)
        xwr_buf[...] = xwr + b_ref[...]

    # Per row tile: mean-neighbor aggregation + root term (f32 accumulation).
    row0 = pl.multiple_of(t * tm, tm)
    agg = jnp.dot(a_ref[...], xwn_buf[...], preferred_element_type=jnp.float32)
    out = agg + xwr_buf[pl.ds(row0, tm), :]

    @pl.when(l < num_layers - 1)
    def _():
        # Hidden layers: ReLU, result stays in VMEM for the next layer.
        # TODO(synk): F.dropout(training=self.training) -> identity in eval mode.
        h_buf[pl.ds(row0, tm), :] = jnp.maximum(out, 0.0).astype(h_buf.dtype)

    @pl.when(l == num_layers - 1)
    def _():
        # Final layer: log_softmax over the real class lanes only (f32 epilogue).
        lane = jax.lax.broadcasted_iota(jnp.int32, out.shape, 1)
        z = jnp.where(lane < num_classes, out, jnp.float32(-1e30))
        m = jnp.max(z, axis=1, keepdims=True)
        s = z - m
        lse = jnp.log(jnp.sum(jnp.exp(s), axis=1, keepdims=True))
        o_ref[...] = (s - lse).astype(o_ref.dtype)


def _pad2d(a, rows, cols):
    out = jnp.zeros((rows, cols), a.dtype)
    return out.at[: a.shape[0], : a.shape[1]].set(a)


def build_mean_adjacency(edge_index, num_nodes, padded_nodes):
    """Dense row-normalized adjacency D_in^{-1} A (mean aggregation, no self loops)."""
    del num_nodes  # padded rows/cols are zero and therefore inert
    src = edge_index[0]
    dst = edge_index[1]
    ones = jnp.ones(src.shape[0], jnp.float32)
    a = jnp.zeros((padded_nodes, padded_nodes), jnp.float32).at[dst, src].add(ones)
    deg = jnp.sum(a, axis=1, keepdims=True)
    return jnp.where(deg > 0, a / jnp.maximum(deg, 1.0), 0.0)


def graphsage_mean_forward(x, edge_index, params, num_classes, *, tm=128):
    n, _ = x.shape
    num_layers = len(params)
    n_pad = ((n + tm - 1) // tm) * tm
    num_tiles = n_pad // tm

    # Plain-JAX glue: sparse scatter for the normalized adjacency, padding, casts.
    a = build_mean_adjacency(edge_index, n, n_pad).astype(jnp.bfloat16)
    x_p = _pad2d(x.astype(jnp.float32), n_pad, LANE).astype(jnp.bfloat16)

    wn = jnp.stack([_pad2d(w_n.astype(jnp.float32), LANE, LANE)
                    for (w_n, _, _) in params]).astype(jnp.bfloat16)
    wr = jnp.stack([_pad2d(w_r.astype(jnp.float32), LANE, LANE)
                    for (_, w_r, _) in params]).astype(jnp.bfloat16)
    bs = jnp.stack([_pad2d(b.reshape(1, -1).astype(jnp.float32), 1, LANE)
                    for (_, _, b) in params])

    # Explicit VMEM budget for the resident set (A slab + operands + scratch).
    bytes_needed = (
        2 * tm * n_pad * 2          # A row slab (bf16, double buffered)
        + 2 * n_pad * LANE * 2      # padded features (bf16)
        + 2 * 2 * LANE * LANE * 2   # W_neigh + W_root blocks (bf16, double buffered)
        + 2 * 1 * LANE * 4          # bias block
        + 2 * tm * LANE * 4         # output tile (f32, double buffered)
        + 2 * n_pad * LANE * 2      # h_buf + xwn_buf scratch (bf16)
        + n_pad * LANE * 4          # xwr_buf scratch (f32)
    )
    vmem_limit = int(min(64 * 1024 * 1024, max(2 * bytes_needed, 16 * 1024 * 1024)))

    flops = int(num_layers * (4 * n_pad * LANE * LANE + 2 * n_pad * n_pad * LANE))
    cost = pl.CostEstimate(
        flops=flops,
        transcendentals=int(n_pad * LANE + n_pad),
        bytes_accessed=int(a.size * 2 + x_p.size * 2 + wn.size * 2 + wr.size * 2
                           + bs.size * 4 + n_pad * LANE * 4),
    )

    kernel = functools.partial(
        _fused_sage_kernel, tm=tm, num_classes=num_classes, num_layers=num_layers
    )

    out = pl.pallas_call(
        kernel,
        out_shape=jax.ShapeDtypeStruct((n_pad, LANE), jnp.float32),
        grid_spec=pltpu.PrefetchScalarGridSpec(
            num_scalar_prefetch=0,
            grid=(num_layers, num_tiles),
            in_specs=[
                pl.BlockSpec((tm, n_pad), lambda l, t: (t, 0)),            # A row slab
                pl.BlockSpec((n_pad, LANE), lambda l, t: (0, 0)),          # padded features
                pl.BlockSpec((None, LANE, LANE), lambda l, t: (l, 0, 0)),  # W_neigh[l]
                pl.BlockSpec((None, LANE, LANE), lambda l, t: (l, 0, 0)),  # W_root[l]
                pl.BlockSpec((None, 1, LANE), lambda l, t: (l, 0, 0)),     # bias[l]
            ],
            out_specs=pl.BlockSpec((tm, LANE), lambda l, t: (t, 0)),
            scratch_shapes=[
                pltpu.VMEM((n_pad, LANE), jnp.bfloat16),   # h (layer activations)
                pltpu.VMEM((n_pad, LANE), jnp.bfloat16),   # H @ W_neigh
                pltpu.VMEM((n_pad, LANE), jnp.float32),    # H @ W_root + b
            ],
        ),
        compiler_params=pltpu.CompilerParams(
            dimension_semantics=("arbitrary", "arbitrary"),
            vmem_limit_bytes=vmem_limit,
        ),
        cost_estimate=cost,
    )(a, x_p, wn, wr, bs)

    return out[:n, :num_classes]


def _reference_forward(x, edge_index, params):
    """Plain-JAX reference mirroring the kernel's bf16 casts."""
    n = x.shape[0]
    a = build_mean_adjacency(edge_index, n, n).astype(jnp.bfloat16).astype(jnp.float32)
    h = x.astype(jnp.bfloat16).astype(jnp.float32)
    out = None
    for i, (w_n, w_r, b) in enumerate(params):
        wn = w_n.astype(jnp.bfloat16).astype(jnp.float32)
        wr = w_r.astype(jnp.bfloat16).astype(jnp.float32)
        hwn = (h @ wn).astype(jnp.bfloat16).astype(jnp.float32)
        out = a @ hwn + h @ wr + b.reshape(1, -1)
        if i < len(params) - 1:
            h = jnp.maximum(out, 0.0).astype(jnp.bfloat16).astype(jnp.float32)
    m = jnp.max(out, axis=1, keepdims=True)
    s = out - m
    return s - jnp.log(jnp.sum(jnp.exp(s), axis=1, keepdims=True))


if __name__ == "__main__":
    N = 128          # number of nodes
    P = 16           # args.p (num_features)
    HIDDEN = 32      # args.hidden
    NUM_CLASSES = 2

    key = jax.random.PRNGKey(0)
    k_x, k_e, *k_w = jax.random.split(key, 8)

    x = jax.random.normal(k_x, (N, P), jnp.float32)

    # Synthetic undirected edge set (SBM-like stand-in).
    E = 512
    src = jax.random.randint(k_e, (E,), 0, N, dtype=jnp.int32)
    dst = jax.random.randint(jax.random.fold_in(k_e, 1), (E,), 0, N, dtype=jnp.int32)
    edge_index = jnp.stack(
        [jnp.concatenate([src, dst]), jnp.concatenate([dst, src])], axis=0
    )

    def glorot(k, fi, fo):
        lim = jnp.sqrt(6.0 / (fi + fo))
        return jax.random.uniform(k, (fi, fo), jnp.float32, -lim, lim)

    dims = [(P, HIDDEN), (HIDDEN, 2 * HIDDEN), (2 * HIDDEN, NUM_CLASSES)]
    params = []
    for i, (fi, fo) in enumerate(dims):
        params.append((
            glorot(k_w[2 * i], fi, fo),                                    # W_neigh
            glorot(k_w[2 * i + 1], fi, fo),                                # W_root
            0.01 * jax.random.normal(jax.random.fold_in(k_e, 10 + i),      # bias
                                     (fo,), jnp.float32),
        ))

    out = graphsage_mean_forward(x, edge_index, params, NUM_CLASSES)
    jax.block_until_ready(out)

    assert out.shape == (N, NUM_CLASSES)
    probs_sum = jnp.sum(jnp.exp(out), axis=1)
    assert jnp.allclose(probs_sum, 1.0, atol=1e-3), "log_softmax rows must normalize"

    ref = _reference_forward(x, edge_index, params)
    assert jnp.allclose(out, ref, atol=1e-1), float(jnp.max(jnp.abs(out - ref)))

    print("KERNEL_OK")
</pallas_src>

<mosaic_0001>
module attributes {stable_mosaic.version = 11 : i64} {
  func.func @_fused_sage_kernel(%arg0: i32, %arg1: i32, %arg2: memref<128x128xbf16, #tpu.memory_space<vmem>>, %arg3: memref<128x128xbf16, #tpu.memory_space<vmem>>, %arg4: memref<1x128x128xbf16, #tpu.memory_space<vmem>>, %arg5: memref<1x128x128xbf16, #tpu.memory_space<vmem>>, %arg6: memref<1x1x128xf32, #tpu.memory_space<vmem>>, %arg7: memref<128x128xf32, #tpu.memory_space<vmem>>, %arg8: memref<128x128xbf16, #tpu.memory_space<vmem>>, %arg9: memref<128x128xbf16, #tpu.memory_space<vmem>>, %arg10: memref<128x128xf32, #tpu.memory_space<vmem>>) attributes {dimension_semantics = [#tpu.dimension_semantics<arbitrary>, #tpu.dimension_semantics<arbitrary>], iteration_bounds = array<i64: 3, 1>, scalar_prefetch = 0 : i64, scratch_operands = 3 : i64, tpu.core_type = #tpu.core_type<tc>, window_params = [{transform_indices = @transform_0, window_bounds = array<i64: 128, 128>}, {pipeline_mode = #tpu.pipeline_mode<synchronous>, transform_indices = @transform_1, window_bounds = array<i64: 128, 128>}, {transform_indices = @transform_2, window_bounds = array<i64: 1, 128, 128>}, {transform_indices = @transform_3, window_bounds = array<i64: 1, 128, 128>}, {transform_indices = @transform_4, window_bounds = array<i64: 1, 1, 128>}, {transform_indices = @transform_5, window_bounds = array<i64: 128, 128>}]} {
    %c0_i32 = arith.constant 0 : i32
    %0 = arith.cmpi eq, %arg0, %c0_i32 : i32
    %c0_i32_0 = arith.constant 0 : i32
    %1 = arith.cmpi eq, %arg1, %c0_i32_0 : i32
    %2 = arith.andi %0, %1 : i1
    %3 = arith.extui %2 : i1 to i32
    %c0_i32_1 = arith.constant 0 : i32
    %4 = arith.cmpi ne, %3, %c0_i32_1 : i32
    scf.if %4 {
      %c0_11 = arith.constant 0 : index
      %c0_12 = arith.constant 0 : index
      %22 = vector.load %arg3[%c0_11, %c0_12] : memref<128x128xbf16, #tpu.memory_space<vmem>>, vector<128x128xbf16>
      %c0_13 = arith.constant 0 : index
      %c0_14 = arith.constant 0 : index
      %23 = vector.load %arg8[%c0_13, %c0_14] : memref<128x128xbf16, #tpu.memory_space<vmem>>, vector<128x128xbf16>
      tpu.vector_store %arg8[%c0_13, %c0_14], %22 {strides = array<i32>} : memref<128x128xbf16, #tpu.memory_space<vmem>>, vector<128x128xbf16>,
    } else {
    }
    %c0_i32_2 = arith.constant 0 : i32
    %5 = arith.cmpi eq, %arg1, %c0_i32_2 : i32
    %6 = arith.extui %5 : i1 to i32
    %c0_i32_3 = arith.constant 0 : i32
    %7 = arith.cmpi ne, %6, %c0_i32_3 : i32
    scf.if %7 {
      %c0_11 = arith.constant 0 : index
      %c0_12 = arith.constant 0 : index
      %22 = vector.load %arg8[%c0_11, %c0_12] : memref<128x128xbf16, #tpu.memory_space<vmem>>, vector<128x128xbf16>
      %c0_13 = arith.constant 0 : index
      %c0_14 = arith.constant 0 : index
      %c0_15 = arith.constant 0 : index
      %23 = vector.load %arg4[%c0_13, %c0_14, %c0_15] : memref<1x128x128xbf16, #tpu.memory_space<vmem>>, vector<1x128x128xbf16>
      %24 = vector.shape_cast %23 : vector<1x128x128xbf16> to vector<128x128xbf16>
      %cst_16 = arith.constant dense<0.000000e+00> : vector<128x128xf32>
      %25 = tpu.matmul %22, %24, %cst_16 {dimension_numbers = #tpu.dot_dimension_numbers<[1], [0], [0], [1], [0, 0, 1, 1], [], []>} : vector<128x128xbf16>, vector<128x128xbf16>, vector<128x128xf32> -> vector<128x128xf32>
      %c0_17 = arith.constant 0 : index
      %c0_18 = arith.constant 0 : index
      %c0_19 = arith.constant 0 : index
      %26 = vector.load %arg5[%c0_17, %c0_18, %c0_19] : memref<1x128x128xbf16, #tpu.memory_space<vmem>>, vector<1x128x128xbf16>
      %27 = vector.shape_cast %26 : vector<1x128x128xbf16> to vector<128x128xbf16>
      %cst_20 = arith.constant dense<0.000000e+00> : vector<128x128xf32>
      %28 = tpu.matmul %22, %27, %cst_20 {dimension_numbers = #tpu.dot_dimension_numbers<[1], [0], [0], [1], [0, 0, 1, 1], [], []>} : vector<128x128xbf16>, vector<128x128xbf16>, vector<128x128xf32> -> vector<128x128xf32>
      %29 = arith.truncf %25 : vector<128x128xf32> to vector<128x128xbf16>
      %c0_21 = arith.constant 0 : index
      %c0_22 = arith.constant 0 : index
      %30 = vector.load %arg9[%c0_21, %c0_22] : memref<128x128xbf16, #tpu.memory_space<vmem>>, vector<128x128xbf16>
      tpu.vector_store %arg9[%c0_21, %c0_22], %29 {strides = array<i32>} : memref<128x128xbf16, #tpu.memory_space<vmem>>, vector<128x128xbf16>,
      %c0_23 = arith.constant 0 : index
      %c0_24 = arith.constant 0 : index
      %c0_25 = arith.constant 0 : index
      %31 = vector.load %arg6[%c0_23, %c0_24, %c0_25] : memref<1x1x128xf32, #tpu.memory_space<vmem>>, vector<1x1x128xf32>
      %32 = vector.shape_cast %31 : vector<1x1x128xf32> to vector<1x128xf32>
      %33 = vector.broadcast %32 : vector<1x128xf32> to vector<128x128xf32>
      %34 = arith.addf %28, %33 : vector<128x128xf32>
      %c0_26 = arith.constant 0 : index
      %c0_27 = arith.constant 0 : index
      %35 = vector.load %arg10[%c0_26, %c0_27] : memref<128x128xf32, #tpu.memory_space<vmem>>, vector<128x128xf32>
      tpu.vector_store %arg10[%c0_26, %c0_27], %34 {strides = array<i32>} : memref<128x128xf32, #tpu.memory_space<vmem>>, vector<128x128xf32>,
    } else {
    }
    %c128_i32 = arith.constant 128 : i32
    %8 = arith.muli %arg1, %c128_i32 : i32
    %9 = tpu.assume_multiple %8, 128 : i32
    %c0 = arith.constant 0 : index
    %c0_4 = arith.constant 0 : index
    %10 = vector.load %arg2[%c0, %c0_4] : memref<128x128xbf16, #tpu.memory_space<vmem>>, vector<128x128xbf16>
    %c0_5 = arith.constant 0 : index
    %c0_6 = arith.constant 0 : index
    %11 = vector.load %arg9[%c0_5, %c0_6] : memref<128x128xbf16, #tpu.memory_space<vmem>>, vector<128x128xbf16>
    %cst = arith.constant dense<0.000000e+00> : vector<128x128xf32>
    %12 = tpu.matmul %10, %11, %cst {dimension_numbers = #tpu.dot_dimension_numbers<[1], [0], [0], [1], [0, 0, 1, 1], [], []>} : vector<128x128xbf16>, vector<128x128xbf16>, vector<128x128xf32> -> vector<128x128xf32>
    %13 = arith.index_cast %9 : i32 to index
    %c0_7 = arith.constant 0 : index
    %14 = vector.load %arg10[%13, %c0_7] : memref<128x128xf32, #tpu.memory_space<vmem>>, vector<128x128xf32>
    %15 = arith.addf %12, %14 : vector<128x128xf32>
    %c2_i32 = arith.constant 2 : i32
    %16 = arith.cmpi slt, %arg0, %c2_i32 : i32
    %17 = arith.extui %16 : i1 to i32
    %c0_i32_8 = arith.constant 0 : i32
    %18 = arith.cmpi ne, %17, %c0_i32_8 : i32
    scf.if %18 {
      %cst_11 = arith.constant 0.000000e+00 : f32
      %22 = vector.broadcast %cst_11 : f32 to vector<128x128xf32>
      %23 = arith.maximumf %15, %22 : vector<128x128xf32>
      %24 = arith.truncf %23 : vector<128x128xf32> to vector<128x128xbf16>
      %25 = arith.index_cast %9 : i32 to index
      %c0_12 = arith.constant 0 : index
      %26 = vector.load %arg8[%25, %c0_12] : memref<128x128xbf16, #tpu.memory_space<vmem>>, vector<128x128xbf16>
      tpu.vector_store %arg8[%25, %c0_12], %24 {strides = array<i32>} : memref<128x128xbf16, #tpu.memory_space<vmem>>, vector<128x128xbf16>,
    } else {
    }
    %c2_i32_9 = arith.constant 2 : i32
    %19 = arith.cmpi eq, %arg0, %c2_i32_9 : i32
    %20 = arith.extui %19 : i1 to i32
    %c0_i32_10 = arith.constant 0 : i32
    %21 = arith.cmpi ne, %20, %c0_i32_10 : i32
    scf.if %21 {
      %22 = tpu.iota {dimensions = array<i32: 1>} : vector<128x128xi32>
      %c2_i32_11 = arith.constant 2 : i32
      %23 = vector.broadcast %c2_i32_11 : i32 to vector<128x128xi32>
      %24 = arith.cmpi slt, %22, %23 : vector<128x128xi32>
      %cst_12 = arith.constant -1.000000e+30 : f32
      %25 = vector.broadcast %cst_12 : f32 to vector<128x128xf32>
      %26 = arith.select %24, %15, %25 : vector<128x128xi1>, vector<128x128xf32>
      %cst_13 = arith.constant dense<0xFF800000> : vector<128xf32>
      %27 = vector.multi_reduction <maximumf>, %26, %cst_13 [1] : vector<128x128xf32> to vector<128xf32>
      %28 = vector.shape_cast %27 : vector<128xf32> to vector<128x1xf32>
      %29 = vector.broadcast %28 : vector<128x1xf32> to vector<128x128xf32>
      %30 = arith.subf %26, %29 : vector<128x128xf32>
      %31 = math.exp %30 : vector<128x128xf32>
      %cst_14 = arith.constant dense<0.000000e+00> : vector<128xf32>
      %32 = vector.multi_reduction <add>, %31, %cst_14 [1] : vector<128x128xf32> to vector<128xf32>
      %33 = vector.shape_cast %32 : vector<128xf32> to vector<128x1xf32>
      %34 = math.log %33 : vector<128x1xf32>
      %35 = vector.broadcast %34 : vector<128x1xf32> to vector<128x128xf32>
      %36 = arith.subf %30, %35 : vector<128x128xf32>
      %c0_15 = arith.constant 0 : index
      %c0_16 = arith.constant 0 : index
      %37 = vector.load %arg7[%c0_15, %c0_16] : memref<128x128xf32, #tpu.memory_space<vmem>>, vector<128x128xf32>
      tpu.vector_store %arg7[%c0_15, %c0_16], %36 {strides = array<i32>} : memref<128x128xf32, #tpu.memory_space<vmem>>, vector<128x128xf32>,
    } else {
    }
    return
  }
  func.func @transform_0(%arg0: i32, %arg1: i32) -> (i32, i32) {
    %c0_i32 = arith.constant 0 : i32
    %c0_i32_0 = arith.constant 0 : i32
    return %arg1, %c0_i32 : i32, i32
  }
  func.func @transform_1(%arg0: i32, %arg1: i32) -> (i32, i32) {
    %c0_i32 = arith.constant 0 : i32
    %c0_i32_0 = arith.constant 0 : i32
    %c0_i32_1 = arith.constant 0 : i32
    return %c0_i32, %c0_i32_0 : i32, i32
  }
  func.func @transform_2(%arg0: i32, %arg1: i32) -> (i32, i32, i32) {
    %c0_i32 = arith.constant 0 : i32
    %c0_i32_0 = arith.constant 0 : i32
    %c0_i32_1 = arith.constant 0 : i32
    return %arg0, %c0_i32, %c0_i32_0 : i32, i32, i32
  }
  func.func @transform_3(%arg0: i32, %arg1: i32) -> (i32, i32, i32) {
    %c0_i32 = arith.constant 0 : i32
    %c0_i32_0 = arith.constant 0 : i32
    %c0_i32_1 = arith.constant 0 : i32
    return %arg0, %c0_i32, %c0_i32_0 : i32, i32, i32
  }
  func.func @transform_4(%arg0: i32, %arg1: i32) -> (i32, i32, i32) {
    %c0_i32 = arith.constant 0 : i32
    %c0_i32_0 = arith.constant 0 : i32
    %c0_i32_1 = arith.constant 0 : i32
    return %arg0, %c0_i32, %c0_i32_0 : i32, i32, i32
  }
  func.func @transform_5(%arg0: i32, %arg1: i32) -> (i32, i32) {
    %c0_i32 = arith.constant 0 : i32
    %c0_i32_0 = arith.constant 0 : i32
    return %arg1, %c0_i32 : i32, i32
  }
}

</mosaic_0001>

<llo_original>
// kernel: tpu_custom_call.1
$region0: #{tpu_custom_call.1}
  #allocation0 [shape = 'u32[]', space=smem, size = 0x4, offset = 0x4, fixed_abs, tag = 'smem constant byte address 0x4 - core index']
  #allocation1 [shape = 'u32[72,128]{1,0:T(1,128)}', space=vmem, size = 0x9000, scoped, tag = 'internal scratch']
  #allocation2 [shape = 'bf16[128,128]{1,0:T(8,128)(2,1)}', space=vmem, size = 0x8000, scoped, tag = 'scratch operand']
  #allocation3 [shape = 'bf16[128,128]{1,0:T(8,128)(2,1)}', space=vmem, size = 0x8000, scoped, tag = 'scratch operand']
  #allocation4 [shape = 'f32[128,128]{1,0:T(8,128)}', space=vmem, size = 0x10000, scoped, tag = 'scratch operand']
  %s0 = inlined_call_operand.hbm [shape: bf16[128,128], index: 0, kind: input, shape index: {}]
  %s1 = inlined_call_operand.hbm [shape: bf16[128,128], index: 1, kind: input, shape index: {}]
  %s2 = inlined_call_operand.hbm [shape: bf16[3,128,128], index: 2, kind: input, shape index: {}]
  %s3 = inlined_call_operand.hbm [shape: bf16[3,128,128], index: 3, kind: input, shape index: {}]
  %s4 = inlined_call_operand.vmem [shape: f32[3,1,128], index: 4, kind: input, shape index: {}]
  %s5 = inlined_call_operand.hbm [shape: f32[128,128], index: 5, kind: output, shape index: {}]
  %s6 = sld [smem:[#allocation0]]
  $region85: #{tpu_custom_call.1} parent=0
    _
  %s8 = ssub.s32 1, %s6
  %s9 = scalar_select 0, %s8, %s6
  $region1: #{tpu_custom_call.1} parent=0
    #allocation5 [shape = 'u8[32768]{0}', space=vmem, size = 0x8000, scoped, tag = 'input window, operand 0, single buffered']
    #allocation6 [shape = 's32[2]{0}', space=sflag, size = 0x8, scoped, tag = 'scoped memory for tpu_custom_call.1']
    #allocation7 [shape = 's32[2]{0}', space=sflag, size = 0x8, scoped, tag = 'scoped memory for tpu_custom_call.1']
    #allocation8 [shape = 'u8[32768]{0}', space=vmem, size = 0x8000, scoped, tag = 'input window, operand 1, single buffered']
    #allocation9 [shape = 's32[1]{0}', space=sflag, size = 0x4, scoped, tag = 'scoped memory for tpu_custom_call.1']
    #allocation10 [shape = 'u8[65536]{0}', space=vmem, size = 0x10000, scoped, tag = 'input window, operand 2']
    #allocation11 [shape = 'u8[65536]{0}', space=vmem, size = 0x10000, scoped, tag = 'input window, operand 3']
    #allocation12 [shape = 'u8[65536]{0}', space=vmem, size = 0x10000, scoped, tag = 'output window, operand 0, single buffered']
    %10 = vsyncpa [#allocation6], 0
    %11 = vsyncpa [#allocation9], 0
    %12 = vsyncpa [#allocation7], 0
    loop: start=0, step=1, limit=5
    $region2: #{tpu_custom_call.1} parent=1 // loop_pre_header
      _
    $region3: #{tpu_custom_call.1} parent=1 // loop_header
      %s14 = sphi 0, %s18
      %p15 = scmp.ge.s32.totalorder %s14, 5
      %s21 = sphi 0, %s33
      %s22 = sphi 0, %s29
      %s23 = sphi 0, %s21
      %s24 = sphi 0, %s22
      %s25 = sphi 0, %s23
      %s26 = sphi 0, %s24
      %s36 = sphi 0, %s38
      %s39 = sphi 0, %s36
      %s40 = sphi 0, %s39
      %s56 = sphi 0, %s40
      %s60 = sphi 0, %s60
      %s62 = sphi 0, %s60
      %s63 = sphi 0, %s62
      %s77 = sphi 0, %s63
      %s83 = sphi 0, %s85
      %s86 = sphi 0, %s83
      %s87 = sphi 0, %s86
      %s103 = sphi 0, %s87
      %s109 = sphi 0, %s111
      %s112 = sphi 0, %s109
      %s113 = sphi 0, %s112
      %s129 = sphi 0, %s113
      %s135 = sphi 0, %s137
      %s138 = sphi 0, %s135
      %s139 = sphi 0, %s138
      %s155 = sphi 0, %s139
      %s161 = sphi 0, %s163
      %s164 = sphi 0, %s161
      %s165 = sphi 0, %s164
      %s181 = sphi 0, %s165
    $region4: #{tpu_custom_call.1} parent=1 // loop_header_branch
      %17 = sbr.rel (%p15) target = $region8
    $region5: #{tpu_custom_call.1} parent=1 // loop_body
      %s19 = ssub.s32 %s14, 1
      %s20 = ssub.s32 %s14, 2
      %s27 = sadd.s32 1, %s22
      %p28 = scmp.ge.s32.totalorder %s27, 1
      %s29 = scalar_select %p28, 0, %s27
      %s30 = sadd.s32 1, %s21
      %s31 = scalar_select %p28, %s30, %s21
      %p32 = scmp.ge.s32.totalorder %s31, 3
      %s33 = scalar_select %p32, 0, %s31
      %s34 = ssub.s32 %s22, %s29
      %p35 = scmp.eq.s32.totalorder %s34, 0
      %s37 = sadd.s32 %s36, 1
      %s38 = scalar_select %p35, %s36, %s37
      %p41 = pneg %p35
      %p42 = scmp.eq.s32.totalorder %s14, 2
      %p43 = por %p41, %p42
      %p44 = scmp.ne.s32.totalorder %s36, %s39
      %p45 = scmp.eq.s32.totalorder %s14, 0
      %p46 = por %p44, %p45
      %p47 = scmp.ne.s32.totalorder %s36, %s39
      %p48 = scmp.eq.s32.totalorder %s19, 2
      %p49 = por %p47, %p48
      %p50 = scmp.ne.s32.totalorder %s39, %s40
      %p51 = scmp.eq.s32.totalorder %s19, 0
      %p52 = por %p50, %p51
      %p53 = scmp.ne.s32.totalorder %s39, %s40
      %p54 = scmp.eq.s32.totalorder %s20, 2
      %p55 = por %p53, %p54
      %p57 = scmp.ne.s32.totalorder %s40, %s56
      %p58 = scmp.eq.s32.totalorder %s20, 0
      %p59 = por %p57, %p58
      %s61 = sadd.s32 %s60, 1
      %p64 = scmp.eq.s32.totalorder %s14, 2
      %p65 = scmp.ne.s32.totalorder %s60, %s62
      %p66 = scmp.eq.s32.totalorder %s14, 0
      %p67 = por %p65, %p66
      %p68 = scmp.ne.s32.totalorder %s60, %s62
      %p69 = scmp.eq.s32.totalorder %s19, 2
      %p70 = por %p68, %p69
      %p71 = scmp.ne.s32.totalorder %s62, %s63
      %p72 = scmp.eq.s32.totalorder %s19, 0
      %p73 = por %p71, %p72
      %p74 = scmp.ne.s32.totalorder %s62, %s63
      %p75 = scmp.eq.s32.totalorder %s20, 2
      %p76 = por %p74, %p75
      %p78 = scmp.ne.s32.totalorder %s63, %s77
      %p79 = scmp.eq.s32.totalorder %s20, 0
      %p80 = por %p78, %p79
      %s81 = ssub.s32 %s21, %s33
      %p82 = scmp.eq.s32.totalorder %s81, 0
      %s84 = sadd.s32 %s83, 1
      %s85 = scalar_select %p82, %s83, %s84
      %p88 = pneg %p82
      %p89 = scmp.eq.s32.totalorder %s14, 2
      %p90 = por %p88, %p89
      %p91 = scmp.ne.s32.totalorder %s83, %s86
      %p92 = scmp.eq.s32.totalorder %s14, 0
      %p93 = por %p91, %p92
      %p94 = scmp.ne.s32.totalorder %s83, %s86
      %p95 = scmp.eq.s32.totalorder %s19, 2
      %p96 = por %p94, %p95
      %p97 = scmp.ne.s32.totalorder %s86, %s87
      %p98 = scmp.eq.s32.totalorder %s19, 0
      %p99 = por %p97, %p98
      %p100 = scmp.ne.s32.totalorder %s86, %s87
      %p101 = scmp.eq.s32.totalorder %s20, 2
      %p102 = por %p100, %p101
      %p104 = scmp.ne.s32.totalorder %s87, %s103
      %p105 = scmp.eq.s32.totalorder %s20, 0
      %p106 = por %p104, %p105
      %s107 = ssub.s32 %s21, %s33
      %p108 = scmp.eq.s32.totalorder %s107, 0
      %s110 = sadd.s32 %s109, 1
      %s111 = scalar_select %p108, %s109, %s110
      %p114 = pneg %p108
      %p115 = scmp.eq.s32.totalorder %s14, 2
      %p116 = por %p114, %p115
      %p117 = scmp.ne.s32.totalorder %s109, %s112
      %p118 = scmp.eq.s32.totalorder %s14, 0
      %p119 = por %p117, %p118
      %p120 = scmp.ne.s32.totalorder %s109, %s112
      %p121 = scmp.eq.s32.totalorder %s19, 2
      %p122 = por %p120, %p121
      %p123 = scmp.ne.s32.totalorder %s112, %s113
      %p124 = scmp.eq.s32.totalorder %s19, 0
      %p125 = por %p123, %p124
      %p126 = scmp.ne.s32.totalorder %s112, %s113
      %p127 = scmp.eq.s32.totalorder %s20, 2
      %p128 = por %p126, %p127
      %p130 = scmp.ne.s32.totalorder %s113, %s129
      %p131 = scmp.eq.s32.totalorder %s20, 0
      %p132 = por %p130, %p131
      %s133 = ssub.s32 %s21, %s33
      %p134 = scmp.eq.s32.totalorder %s133, 0
      %s136 = sadd.s32 %s135, 1
      %s137 = scalar_select %p134, %s135, %s136
      %p140 = pneg %p134
      %p141 = scmp.eq.s32.totalorder %s14, 2
      %p142 = por %p140, %p141
      %p143 = scmp.ne.s32.totalorder %s135, %s138
      %p144 = scmp.eq.s32.totalorder %s14, 0
      %p145 = por %p143, %p144
      %p146 = scmp.ne.s32.totalorder %s135, %s138
      %p147 = scmp.eq.s32.totalorder %s19, 2
      %p148 = por %p146, %p147
      %p149 = scmp.ne.s32.totalorder %s138, %s139
      %p150 = scmp.eq.s32.totalorder %s19, 0
      %p151 = por %p149, %p150
      %p152 = scmp.ne.s32.totalorder %s138, %s139
      %p153 = scmp.eq.s32.totalorder %s20, 2
      %p154 = por %p152, %p153
      %p156 = scmp.ne.s32.totalorder %s139, %s155
      %p157 = scmp.eq.s32.totalorder %s20, 0
      %p158 = por %p156, %p157
      %s159 = ssub.s32 %s22, %s29
      %p160 = scmp.eq.s32.totalorder %s159, 0
      %s162 = sadd.s32 %s161, 1
      %s163 = scalar_select %p160, %s161, %s162
      %p166 = pneg %p160
      %p167 = scmp.eq.s32.totalorder %s14, 2
      %p168 = por %p166, %p167
      %p169 = scmp.ne.s32.totalorder %s161, %s164
      %p170 = scmp.eq.s32.totalorder %s14, 0
      %p171 = por %p169, %p170
      %p172 = scmp.ne.s32.totalorder %s161, %s164
      %p173 = scmp.eq.s32.totalorder %s19, 2
      %p174 = por %p172, %p173
      %p175 = scmp.ne.s32.totalorder %s164, %s165
      %p176 = scmp.eq.s32.totalorder %s19, 0
      %p177 = por %p175, %p176
      %p178 = scmp.ne.s32.totalorder %s164, %s165
      %p179 = scmp.eq.s32.totalorder %s20, 2
      %p180 = por %p178, %p179
      %p182 = scmp.ne.s32.totalorder %s165, %s181
      %p183 = scmp.eq.s32.totalorder %s20, 0
      %p184 = por %p182, %p183
      %p185 = scmp.le.s32.totalorder 1, %s14
      %p186 = scmp.lt.s32.totalorder %s14, 4
      %p187 = pnand %p185, %p186
      %p188 = pneg %p187
      // Predicated region
      $region9: #{tpu_custom_call.1} parent=5 // pred_check
        _
      $region10: #{tpu_custom_call.1} parent=5 // pred_check_branch
        %190 = sbr.rel (%p187) target = $region12
      $region11: #{tpu_custom_call.1} parent=5 // pred_region
        %s191 = ssub.s32 %s14, 1
        // Predicated region
        $region13: #{tpu_custom_call.1} parent=11 // pred_check
          %p192 = pneg %p52
        $region14: #{tpu_custom_call.1} parent=11 // pred_check_branch
          %194 = sbr.rel (%p192) target = $region16
        $region15: #{tpu_custom_call.1} parent=11 // pred_region
          %s195 = smul.u32 16, %s24
          %197 = vsyncadd [#allocation6], 0
          %s198 = smul.addr %s195, 4
          %s199 = scalar_lea.hbm %s0, %s198
          %s200 = sshll.u32 %s199, 4
          %s201 = int_to_ptr.hbm [resolvable:$true] %s200
          %s202 = sshll.u32 [#allocation5], 4
          %s203 = int_to_ptr.vmem [resolvable:$true] %s202
          %208 = dma.hbm_to_vmem [thread:$0]  %s201, 1024, %s203, [#allocation6], 64, 64, 4
        $region16: #{tpu_custom_call.1} parent=11 // pred_fallthru
          _
        // Predicated region
        $region17: #{tpu_custom_call.1} parent=11 // pred_check
          %p209 = pneg %p73
        $region18: #{tpu_custom_call.1} parent=11 // pred_check_branch
          %211 = sbr.rel (%p209) target = $region20
        $region19: #{tpu_custom_call.1} parent=11 // pred_region
          %213 = vsyncadd [#allocation9], 0
          %s214 = sshll.u32 %s1, 4
          %s215 = int_to_ptr.hbm [resolvable:$true] %s214
          %s216 = sshll.u32 [#allocation8], 4
          %s217 = int_to_ptr.vmem [resolvable:$true] %s216
          %222 = dma.hbm_to_vmem [thread:$0]  %s215, 1024, %s217, [#allocation9], 64, 64, 4
        $region20: #{tpu_custom_call.1} parent=11 // pred_fallthru
          _
      $region12: #{tpu_custom_call.1} parent=5 // pred_fallthru
        _
      %p223 = scmp.lt.s32.totalorder %s14, 3
      // Predicated region
      $region21: #{tpu_custom_call.1} parent=5 // pred_check
        %p224 = pneg %p223
      $region22: #{tpu_custom_call.1} parent=5 // pred_check_branch
        %226 = sbr.rel (%p224) target = $region24
      $region23: #{tpu_custom_call.1} parent=5 // pred_region
        // Predicated region
        $region25: #{tpu_custom_call.1} parent=23 // pred_check
          %p227 = pneg %p93
        $region26: #{tpu_custom_call.1} parent=23 // pred_check_branch
          %229 = sbr.rel (%p227) target = $region28
        $region27: #{tpu_custom_call.1} parent=23 // pred_region
          %s230 = sand.u32 %s14, 1
          %s231 = scalar_lea.sflag [#allocation6], %s230
          %s232 = sand.u32 %s83, 1
          %s233 = smul.addr %s232, 64
          %s234 = scalar_lea.vmem [#allocation10], %s233
          %236 = vsyncadd %s231, 0
          %s237 = smul.addr %s21, 16
          %s238 = smul.addr %s237, 4
          %s239 = scalar_lea.hbm %s2, %s238
          %s240 = sshll.u32 %s239, 4
          %s241 = int_to_ptr.hbm [resolvable:$true] %s240
          %s242 = sshll.u32 %s234, 4
          %s243 = int_to_ptr.vmem [resolvable:$true] %s242
          %248 = dma.hbm_to_vmem [thread:$0]  %s241, 1024, %s243, %s231, 64, 64, 4
        $region28: #{tpu_custom_call.1} parent=23 // pred_fallthru
          _
        // Predicated region
        $region29: #{tpu_custom_call.1} parent=23 // pred_check
          %p249 = pneg %p119
        $region30: #{tpu_custom_call.1} parent=23 // pred_check_branch
          %251 = sbr.rel (%p249) target = $region32
        $region31: #{tpu_custom_call.1} parent=23 // pred_region
          %s252 = sand.u32 %s14, 1
          %s253 = scalar_lea.sflag [#allocation6], %s252
          %s254 = sand.u32 %s109, 1
          %s255 = smul.addr %s254, 64
          %s256 = scalar_lea.vmem [#allocation11], %s255
          %258 = vsyncadd %s253, 0
          %s259 = smul.addr %s21, 16
          %s260 = smul.addr %s259, 4
          %s261 = scalar_lea.hbm %s3, %s260
          %s262 = sshll.u32 %s261, 4
          %s263 = int_to_ptr.hbm [resolvable:$true] %s262
          %s264 = sshll.u32 %s256, 4
          %s265 = int_to_ptr.vmem [resolvable:$true] %s264
          %270 = dma.hbm_to_vmem [thread:$0]  %s263, 1024, %s265, %s253, 64, 64, 4
        $region32: #{tpu_custom_call.1} parent=23 // pred_fallthru
          _
        // Predicated region
        $region33: #{tpu_custom_call.1} parent=23 // pred_check
          %p271 = pneg %p145
        $region34: #{tpu_custom_call.1} parent=23 // pred_check_branch
          %273 = sbr.rel (%p271) target = $region36
        $region35: #{tpu_custom_call.1} parent=23 // pred_region
          %p274 = scmp.lt.s32.totalorder %s21, 2
          %s275 = scalar_select %p274, %s21, 2
          %s276 = scalar_lea.vmem %s4, %s275
        $region36: #{tpu_custom_call.1} parent=23 // pred_fallthru
          _
      $region24: #{tpu_custom_call.1} parent=5 // pred_fallthru
        _
      %p277 = scmp.le.s32.totalorder 1, %s14
      %p278 = scmp.lt.s32.totalorder %s14, 4
      %p279 = pnand %p277, %p278
      %p280 = pneg %p279
      // Predicated region
      $region37: #{tpu_custom_call.1} parent=5 // pred_check
        _
      $region38: #{tpu_custom_call.1} parent=5 // pred_check_branch
        %282 = sbr.rel (%p279) target = $region40
      $region39: #{tpu_custom_call.1} parent=5 // pred_region
        %s283 = ssub.s32 %s14, 1
        // Predicated region
        $region41: #{tpu_custom_call.1} parent=39 // pred_check
          %p284 = pneg %p52
        $region42: #{tpu_custom_call.1} parent=39 // pred_check_branch
          %286 = sbr.rel (%p284) target = $region44
        $region43: #{tpu_custom_call.1} parent=39 // pred_region
          %288 = dma.done [#allocation6], 1024
        $region44: #{tpu_custom_call.1} parent=39 // pred_fallthru
          _
        // Predicated region
        $region45: #{tpu_custom_call.1} parent=39 // pred_check
          %p289 = pneg %p73
        $region46: #{tpu_custom_call.1} parent=39 // pred_check_branch
          %291 = sbr.rel (%p289) target = $region48
        $region47: #{tpu_custom_call.1} parent=39 // pred_region
          %293 = dma.done [#allocation9], 1024
        $region48: #{tpu_custom_call.1} parent=39 // pred_fallthru
          _
        %s294 = sand.u32 %s19, 1
        %s295 = scalar_lea.sflag [#allocation6], %s294
        %s296 = sand.u32 %s86, 1
        %s297 = smul.addr %s296, 64
        %s298 = scalar_lea.vmem [#allocation10], %s297
        // Predicated region
        $region49: #{tpu_custom_call.1} parent=39 // pred_check
          %p299 = pneg %p99
        $region50: #{tpu_custom_call.1} parent=39 // pred_check_branch
          %301 = sbr.rel (%p299) target = $region52
        $region51: #{tpu_custom_call.1} parent=39 // pred_region
          %303 = dma.done %s295, 1024
        $region52: #{tpu_custom_call.1} parent=39 // pred_fallthru
          _
        %s304 = sand.u32 %s19, 1
        %s305 = scalar_lea.sflag [#allocation6], %s304
        %s306 = sand.u32 %s112, 1
        %s307 = smul.addr %s306, 64
        %s308 = scalar_lea.vmem [#allocation11], %s307
        // Predicated region
        $region53: #{tpu_custom_call.1} parent=39 // pred_check
          %p309 = pneg %p125
        $region54: #{tpu_custom_call.1} parent=39 // pred_check_branch
          %311 = sbr.rel (%p309) target = $region56
        $region55: #{tpu_custom_call.1} parent=39 // pred_region
          %313 = dma.done %s305, 1024
        $region56: #{tpu_custom_call.1} parent=39 // pred_fallthru
          _
        %p314 = pneg %p52
        %p315 = pneg %p49
        %p316 = pneg %p73
        %p317 = pneg %p70
        %s318 = sand.u32 %s19, 1
        %s319 = scalar_lea.sflag [#allocation6], %s318
        %s320 = sand.u32 %s86, 1
        %s321 = smul.addr %s320, 64
        %s322 = scalar_lea.vmem [#allocation10], %s321
        %p323 = pneg %p99
        %p324 = pneg %p96
        %s325 = sand.u32 %s19, 1
        %s326 = scalar_lea.sflag [#allocation6], %s325
        %s327 = sand.u32 %s112, 1
        %s328 = smul.addr %s327, 64
        %s329 = scalar_lea.vmem [#allocation11], %s328
        %p330 = pneg %p125
        %p331 = pneg %p122
        %p332 = scmp.lt.s32.totalorder %s23, 2
        %s333 = scalar_select %p332, %s23, 2
        %s334 = scalar_lea.vmem %s4, %s333
        %p335 = pneg %p151
        %p336 = pneg %p148
        %p337 = pneg %p177
        %p338 = pneg %p174
        %s339 = smul.u32 16, %s24
        %p340 = scmp.lt.s32.totalorder %s23, 2
        %s341 = scalar_select %p340, %s23, 2
        %s342 = scalar_lea.vmem %s4, %s341
        %s343 = smul.u32 16, %s24
        %p344 = scmp.eq.s32.totalorder %s23, 0
        %p345 = scmp.eq.s32.totalorder %s24, 0
        %p346 = pnand %p344, %p345
        %p347 = pneg %p346
        // Predicated region
        $region57: #{tpu_custom_call.1} parent=39 // pred_check
          _
        $region58: #{tpu_custom_call.1} parent=39 // pred_check_branch
          %349 = sbr.rel (%p346) target = $region60
        $region59: #{tpu_custom_call.1} parent=39 // pred_region
          %v350 = vld [vmem:[#allocation8] sm:$0xf]
          %v351 = vld [vmem:[#allocation8 + $0x4] sm:$0xf]
          %v352 = vld [vmem:[#allocation8 + $0x8] sm:$0xf]
          %v353 = vld [vmem:[#allocation8 + $0xc] sm:$0xf]
          %v354 = vld [vmem:[#allocation8 + $0x10] sm:$0xf]
          %v355 = vld [vmem:[#allocation8 + $0x14] sm:$0xf]
          %v356 = vld [vmem:[#allocation8 + $0x18] sm:$0xf]
          %v357 = vld [vmem:[#allocation8 + $0x1c] sm:$0xf]
          %v358 = vld [vmem:[#allocation8 + $0x20] sm:$0xf]
          %v359 = vld [vmem:[#allocation8 + $0x24] sm:$0xf]
          %v360 = vld [vmem:[#allocation8 + $0x28] sm:$0xf]
          %v361 = vld [vmem:[#allocation8 + $0x2c] sm:$0xf]
          %v362 = vld [vmem:[#allocation8 + $0x30] sm:$0xf]
          %v363 = vld [vmem:[#allocation8 + $0x34] sm:$0xf]
          %v364 = vld [vmem:[#allocation8 + $0x38] sm:$0xf]
          %v365 = vld [vmem:[#allocation8 + $0x3c] sm:$0xf]
          %366 = vst [vmem:[#allocation2] sm:$0xf] %v350
          %367 = vst [vmem:[#allocation2 + $0x4] sm:$0xf] %v351
          %368 = vst [vmem:[#allocation2 + $0x8] sm:$0xf] %v352
          %369 = vst [vmem:[#allocation2 + $0xc] sm:$0xf] %v353
          %370 = vst [vmem:[#allocation2 + $0x10] sm:$0xf] %v354
          %371 = vst [vmem:[#allocation2 + $0x14] sm:$0xf] %v355
          %372 = vst [vmem:[#allocation2 + $0x18] sm:$0xf] %v356
          %373 = vst [vmem:[#allocation2 + $0x1c] sm:$0xf] %v357
          %374 = vst [vmem:[#allocation2 + $0x20] sm:$0xf] %v358
          %375 = vst [vmem:[#allocation2 + $0x24] sm:$0xf] %v359
          %376 = vst [vmem:[#allocation2 + $0x28] sm:$0xf] %v360
          %377 = vst [vmem:[#allocation2 + $0x2c] sm:$0xf] %v361
          %378 = vst [vmem:[#allocation2 + $0x30] sm:$0xf] %v362
          %379 = vst [vmem:[#allocation2 + $0x34] sm:$0xf] %v363
          %380 = vst [vmem:[#allocation2 + $0x38] sm:$0xf] %v364
          %381 = vst [vmem:[#allocation2 + $0x3c] sm:$0xf] %v365
        $region60: #{tpu_custom_call.1} parent=39 // pred_fallthru
          _
        // Predicated region
        $region61: #{tpu_custom_call.1} parent=39 // pred_check
          %p382 = pneg %p345
        $region62: #{tpu_custom_call.1} parent=39 // pred_check_branch
          %384 = sbr.rel (%p382) target = $region64
        $region63: #{tpu_custom_call.1} parent=39 // pred_region
          %v385 = vld [vmem:[#allocation2] sm:$0xf]
          %v386 = vld [vmem:[#allocation2 + $0x4] sm:$0xf]
          %v387 = vld [vmem:[#allocation2 + $0x8] sm:$0xf]
          %v388 = vld [vmem:[#allocation2 + $0xc] sm:$0xf]
          %v389 = vld [vmem:[#allocation2 + $0x10] sm:$0xf]
          %v390 = vld [vmem:[#allocation2 + $0x14] sm:$0xf]
          %v391 = vld [vmem:[#allocation2 + $0x18] sm:$0xf]
          %v392 = vld [vmem:[#allocation2 + $0x1c] sm:$0xf]
          %v393 = vld [vmem:[#allocation2 + $0x20] sm:$0xf]
          %v394 = vld [vmem:[#allocation2 + $0x24] sm:$0xf]
          %v395 = vld [vmem:[#allocation2 + $0x28] sm:$0xf]
          %v396 = vld [vmem:[#allocation2 + $0x2c] sm:$0xf]
          %v397 = vld [vmem:[#allocation2 + $0x30] sm:$0xf]
          %v398 = vld [vmem:[#allocation2 + $0x34] sm:$0xf]
          %v399 = vld [vmem:[#allocation2 + $0x38] sm:$0xf]
          %v400 = vld [vmem:[#allocation2 + $0x3c] sm:$0xf]
          %v401 = vld [vmem:[%s298] sm:$0xf]
          %v402 = vld [vmem:[%s298 + $0x4] sm:$0xf]
          %v403 = vld [vmem:[%s298 + $0x8] sm:$0xf]
          %v404 = vld [vmem:[%s298 + $0xc] sm:$0xf]
          %v405 = vld [vmem:[%s298 + $0x10] sm:$0xf]
          %v406 = vld [vmem:[%s298 + $0x14] sm:$0xf]
          %v407 = vld [vmem:[%s298 + $0x18] sm:$0xf]
          %v408 = vld [vmem:[%s298 + $0x1c] sm:$0xf]
          %v409 = vld [vmem:[%s298 + $0x20] sm:$0xf]
          %v410 = vld [vmem:[%s298 + $0x24] sm:$0xf]
          %v411 = vld [vmem:[%s298 + $0x28] sm:$0xf]
          %v412 = vld [vmem:[%s298 + $0x2c] sm:$0xf]
          %v413 = vld [vmem:[%s298 + $0x30] sm:$0xf]
          %v414 = vld [vmem:[%s298 + $0x34] sm:$0xf]
          %v415 = vld [vmem:[%s298 + $0x38] sm:$0xf]
          %v416 = vld [vmem:[%s298 + $0x3c] sm:$0xf]
          %v433 = vunpack.c.l.b16 %v385
          %v434 = vunpack.c.l.b16 %v386
          %v435 = vunpack.c.l.b16 %v387
          %v436 = vunpack.c.l.b16 %v388
          %v437 = vunpack.c.l.b16 %v389
          %v438 = vunpack.c.l.b16 %v390
          %v439 = vunpack.c.l.b16 %v391
          %v440 = vunpack.c.l.b16 %v392
          %v441 = vunpack.c.l.b16 %v393
          %v442 = vunpack.c.l.b16 %v394
          %v443 = vunpack.c.l.b16 %v395
          %v444 = vunpack.c.l.b16 %v396
          %v445 = vunpack.c.l.b16 %v397
          %v446 = vunpack.c.l.b16 %v398
          %v447 = vunpack.c.l.b16 %v399
          %v448 = vunpack.c.l.b16 %v400
          %v449 = vpack.c.b16 %v434, %v433
          %v450 = vpack.c.b16 %v436, %v435
          %v451 = vpack.c.b16 %v438, %v437
          %v452 = vpack.c.b16 %v440, %v439
          %v453 = vpack.c.b16 %v442, %v441
          %v454 = vpack.c.b16 %v444, %v443
          %v455 = vpack.c.b16 %v446, %v445
          %v456 = vpack.c.b16 %v448, %v447
          %v481 = vunpack.c.l.b16 %v401
          %v482 = vunpack.c.l.b16 %v402
          %v483 = vunpack.c.l.b16 %v403
          %v484 = vunpack.c.l.b16 %v404
          %v485 = vunpack.c.l.b16 %v405
          %v486 = vunpack.c.l.b16 %v406
          %v487 = vunpack.c.l.b16 %v407
          %v488 = vunpack.c.l.b16 %v408
          %v489 = vunpack.c.l.b16 %v409
          %v490 = vunpack.c.l.b16 %v410
          %v491 = vunpack.c.l.b16 %v411
          %v492 = vunpack.c.l.b16 %v412
          %v493 = vunpack.c.l.b16 %v413
          %v494 = vunpack.c.l.b16 %v414
          %v495 = vunpack.c.l.b16 %v415
          %v496 = vunpack.c.l.b16 %v416
          %v497 = vpack.c.b16 %v482, %v481
          %v498 = vpack.c.b16 %v484, %v483
          %v499 = vpack.c.b16 %v486, %v485
          %v500 = vpack.c.b16 %v488, %v487
          %v501 = vpack.c.b16 %v490, %v489
          %v502 = vpack.c.b16 %v492, %v491
          %v503 = vpack.c.b16 %v494, %v493
          %v504 = vpack.c.b16 %v496, %v495
          %513 = vmatpush.bf16.msra.mxu0 %v504
          %514 = vmatpush.bf16.msra.mxu0 %v503
          %515 = vmatpush.bf16.msra.mxu0 %v502
          %516 = vmatpush.bf16.msra.mxu0 %v501
          %517 = vmatpush.bf16.msra.mxu0 %v500
          %518 = vmatpush.bf16.msra.mxu0 %v499
          %519 = vmatpush.bf16.msra.mxu0 %v498
          %520 = vmatpush.bf16.msra.mxu0 %v497
          %521 = vmatmul.bf16.gmra.mxu0 %v449
          %v522 = vpop.f32.mrf.mxu0
          %v523 = vadd.f32 0.0, %v522
          %v524 = vpop.f32.mrf.mxu0
          %v525 = vadd.f32 0.0, %v524
          %526 = vmatmul.bf16.gmra.mxu0 %v450
          %v527 = vpop.f32.mrf.mxu0
          %v528 = vadd.f32 0.0, %v527
          %v529 = vpop.f32.mrf.mxu0
          %v530 = vadd.f32 0.0, %v529
          %531 = vmatmul.bf16.gmra.mxu0 %v451
          %v532 = vpop.f32.mrf.mxu0
          %v533 = vadd.f32 0.0, %v532
          %v534 = vpop.f32.mrf.mxu0
          %v535 = vadd.f32 0.0, %v534
          %536 = vmatmul.bf16.gmra.mxu0 %v452
          %v537 = vpop.f32.mrf.mxu0
          %v538 = vadd.f32 0.0, %v537
          %v539 = vpop.f32.mrf.mxu0
          %v540 = vadd.f32 0.0, %v539
          %541 = vmatmul.bf16.gmra.mxu0 %v453
          %v542 = vpop.f32.mrf.mxu0
          %v543 = vadd.f32 0.0, %v542
          %v544 = vpop.f32.mrf.mxu0
          %v545 = vadd.f32 0.0, %v544
          %546 = vmatmul.bf16.gmra.mxu0 %v454
          %v547 = vpop.f32.mrf.mxu0
          %v548 = vadd.f32 0.0, %v547
          %v549 = vpop.f32.mrf.mxu0
          %v550 = vadd.f32 0.0, %v549
          %551 = vmatmul.bf16.gmra.mxu0 %v455
          %v552 = vpop.f32.mrf.mxu0
          %v553 = vadd.f32 0.0, %v552
          %v554 = vpop.f32.mrf.mxu0
          %v555 = vadd.f32 0.0, %v554
          %556 = vmatmul.bf16.gmra.mxu0 %v456
          %v557 = vpop.f32.mrf.mxu0
          %v558 = vadd.f32 0.0, %v557
          %v559 = vpop.f32.mrf.mxu0
          %v560 = vadd.f32 0.0, %v559
          %561 = vdwg.mxu0
          %v562 = vld [vmem:[%s308] sm:$0xf]
          %v563 = vld [vmem:[%s308 + $0x4] sm:$0xf]
          %v564 = vld [vmem:[%s308 + $0x8] sm:$0xf]
          %v565 = vld [vmem:[%s308 + $0xc] sm:$0xf]
          %v566 = vld [vmem:[%s308 + $0x10] sm:$0xf]
          %v567 = vld [vmem:[%s308 + $0x14] sm:$0xf]
          %v568 = vld [vmem:[%s308 + $0x18] sm:$0xf]
          %v569 = vld [vmem:[%s308 + $0x1c] sm:$0xf]
          %v570 = vld [vmem:[%s308 + $0x20] sm:$0xf]
          %v571 = vld [vmem:[%s308 + $0x24] sm:$0xf]
          %v572 = vld [vmem:[%s308 + $0x28] sm:$0xf]
          %v573 = vld [vmem:[%s308 + $0x2c] sm:$0xf]
          %v574 = vld [vmem:[%s308 + $0x30] sm:$0xf]
          %v575 = vld [vmem:[%s308 + $0x34] sm:$0xf]
          %v576 = vld [vmem:[%s308 + $0x38] sm:$0xf]
          %v577 = vld [vmem:[%s308 + $0x3c] sm:$0xf]
          %v578 = vpack.c.bf16 %v523, %v523
          %v579 = vpack.c.bf16 %v525, %v525
          %v580 = vpack.c.bf16 %v528, %v528
          %v581 = vpack.c.bf16 %v530, %v530
          %v582 = vpack.c.bf16 %v533, %v533
          %v583 = vpack.c.bf16 %v535, %v535
          %v584 = vpack.c.bf16 %v538, %v538
          %v585 = vpack.c.bf16 %v540, %v540
          %v586 = vpack.c.bf16 %v543, %v543
          %v587 = vpack.c.bf16 %v545, %v545
          %v588 = vpack.c.bf16 %v548, %v548
          %v589 = vpack.c.bf16 %v550, %v550
          %v590 = vpack.c.bf16 %v553, %v553
          %v591 = vpack.c.bf16 %v555, %v555
          %v592 = vpack.c.bf16 %v558, %v558
          %v593 = vpack.c.bf16 %v560, %v560
          %594 = vst [vmem:[#allocation3] sm:$0xf] %v578
          %595 = vst [vmem:[#allocation3 + $0x4] sm:$0xf] %v579
          %596 = vst [vmem:[#allocation3 + $0x8] sm:$0xf] %v580
          %597 = vst [vmem:[#allocation3 + $0xc] sm:$0xf] %v581
          %598 = vst [vmem:[#allocation3 + $0x10] sm:$0xf] %v582
          %599 = vst [vmem:[#allocation3 + $0x14] sm:$0xf] %v583
          %600 = vst [vmem:[#allocation3 + $0x18] sm:$0xf] %v584
          %601 = vst [vmem:[#allocation3 + $0x1c] sm:$0xf] %v585
          %602 = vst [vmem:[#allocation3 + $0x20] sm:$0xf] %v586
          %603 = vst [vmem:[#allocation3 + $0x24] sm:$0xf] %v587
          %604 = vst [vmem:[#allocation3 + $0x28] sm:$0xf] %v588
          %605 = vst [vmem:[#allocation3 + $0x2c] sm:$0xf] %v589
          %606 = vst [vmem:[#allocation3 + $0x30] sm:$0xf] %v590
          %607 = vst [vmem:[#allocation3 + $0x34] sm:$0xf] %v591
          %608 = vst [vmem:[#allocation3 + $0x38] sm:$0xf] %v592
          %609 = vst [vmem:[#allocation3 + $0x3c] sm:$0xf] %v593
          %v610 = vld [vmem:[%s342] sm:$0x1]
          %v612 = vperm.slane %v610, 0
          %v630 = vunpack.c.l.b16 %v562
          %v631 = vunpack.c.l.b16 %v563
          %v632 = vunpack.c.l.b16 %v564
          %v633 = vunpack.c.l.b16 %v565
          %v634 = vunpack.c.l.b16 %v566
          %v635 = vunpack.c.l.b16 %v567
          %v636 = vunpack.c.l.b16 %v568
          %v637 = vunpack.c.l.b16 %v569
          %v638 = vunpack.c.l.b16 %v570
          %v639 = vunpack.c.l.b16 %v571
          %v640 = vunpack.c.l.b16 %v572
          %v641 = vunpack.c.l.b16 %v573
          %v642 = vunpack.c.l.b16 %v574
          %v643 = vunpack.c.l.b16 %v575
          %v644 = vunpack.c.l.b16 %v576
          %v645 = vunpack.c.l.b16 %v577
          %v646 = vpack.c.b16 %v631, %v630
          %v647 = vpack.c.b16 %v633, %v632
          %v648 = vpack.c.b16 %v635, %v634
          %v649 = vpack.c.b16 %v637, %v636
          %v650 = vpack.c.b16 %v639, %v638
          %v651 = vpack.c.b16 %v641, %v640
          %v652 = vpack.c.b16 %v643, %v642
          %v653 = vpack.c.b16 %v645, %v644
          %662 = vmatpush.bf16.msra.mxu0 %v653
          %663 = vmatpush.bf16.msra.mxu0 %v652
          %664 = vmatpush.bf16.msra.mxu0 %v651
          %665 = vmatpush.bf16.msra.mxu0 %v650
          %666 = vmatpush.bf16.msra.mxu0 %v649
          %667 = vmatpush.bf16.msra.mxu0 %v648
          %668 = vmatpush.bf16.msra.mxu0 %v647
          %669 = vmatpush.bf16.msra.mxu0 %v646
          %670 = vmatmul.bf16.gmra.mxu0 %v449
          %v671 = vpop.f32.mrf.mxu0
          %v672 = vadd.f32 %v612, %v671
          %v673 = vpop.f32.mrf.mxu0
          %v674 = vadd.f32 %v612, %v673
          %675 = vmatmul.bf16.gmra.mxu0 %v450
          %v676 = vpop.f32.mrf.mxu0
          %v677 = vadd.f32 %v612, %v676
          %v678 = vpop.f32.mrf.mxu0
          %v679 = vadd.f32 %v612, %v678
          %680 = vmatmul.bf16.gmra.mxu0 %v451
          %v681 = vpop.f32.mrf.mxu0
          %v682 = vadd.f32 %v612, %v681
          %v683 = vpop.f32.mrf.mxu0
          %v684 = vadd.f32 %v612, %v683
          %685 = vmatmul.bf16.gmra.mxu0 %v452
          %v686 = vpop.f32.mrf.mxu0
          %v687 = vadd.f32 %v612, %v686
          %v688 = vpop.f32.mrf.mxu0
          %v689 = vadd.f32 %v612, %v688
          %690 = vmatmul.bf16.gmra.mxu0 %v453
          %v691 = vpop.f32.mrf.mxu0
          %v692 = vadd.f32 %v612, %v691
          %v693 = vpop.f32.mrf.mxu0
          %v694 = vadd.f32 %v612, %v693
          %695 = vmatmul.bf16.gmra.mxu0 %v454
          %v696 = vpop.f32.mrf.mxu0
          %v697 = vadd.f32 %v612, %v696
          %v698 = vpop.f32.mrf.mxu0
          %v699 = vadd.f32 %v612, %v698
          %700 = vmatmul.bf16.gmra.mxu0 %v455
          %v701 = vpop.f32.mrf.mxu0
          %v702 = vadd.f32 %v612, %v701
          %v703 = vpop.f32.mrf.mxu0
          %v704 = vadd.f32 %v612, %v703
          %705 = vmatmul.bf16.gmra.mxu0 %v456
          %v706 = vpop.f32.mrf.mxu0
          %v707 = vadd.f32 %v612, %v706
          %v708 = vpop.f32.mrf.mxu0
          %v709 = vadd.f32 %v612, %v708
          %710 = vdwg.mxu0
          %711 = vst [vmem:[#allocation4] sm:$0xff] %v672
          %712 = vst [vmem:[#allocation4 + $0x8] sm:$0xff] %v674
          %713 = vst [vmem:[#allocation4 + $0x10] sm:$0xff] %v677
          %714 = vst [vmem:[#allocation4 + $0x18] sm:$0xff] %v679
          %715 = vst [vmem:[#allocation4 + $0x20] sm:$0xff] %v682
          %716 = vst [vmem:[#allocation4 + $0x28] sm:$0xff] %v684
          %717 = vst [vmem:[#allocation4 + $0x30] sm:$0xff] %v687
          %718 = vst [vmem:[#allocation4 + $0x38] sm:$0xff] %v689
          %719 = vst [vmem:[#allocation4 + $0x40] sm:$0xff] %v692
          %720 = vst [vmem:[#allocation4 + $0x48] sm:$0xff] %v694
          %721 = vst [vmem:[#allocation4 + $0x50] sm:$0xff] %v697
          %722 = vst [vmem:[#allocation4 + $0x58] sm:$0xff] %v699
          %723 = vst [vmem:[#allocation4 + $0x60] sm:$0xff] %v702
          %724 = vst [vmem:[#allocation4 + $0x68] sm:$0xff] %v704
          %725 = vst [vmem:[#allocation4 + $0x70] sm:$0xff] %v707
          %726 = vst [vmem:[#allocation4 + $0x78] sm:$0xff] %v709
        $region64: #{tpu_custom_call.1} parent=39 // pred_fallthru
          _
        %s727 = smul.u32 %s24, 128
        %v728 = vld [vmem:[#allocation5] sm:$0xf]
        %v729 = vld [vmem:[#allocation5 + $0x4] sm:$0xf]
        %v730 = vld [vmem:[#allocation5 + $0x8] sm:$0xf]
        %v731 = vld [vmem:[#allocation5 + $0xc] sm:$0xf]
        %v732 = vld [vmem:[#allocation5 + $0x10] sm:$0xf]
        %v733 = vld [vmem:[#allocation5 + $0x14] sm:$0xf]
        %v734 = vld [vmem:[#allocation5 + $0x18] sm:$0xf]
        %v735 = vld [vmem:[#allocation5 + $0x1c] sm:$0xf]
        %v736 = vld [vmem:[#allocation5 + $0x20] sm:$0xf]
        %v737 = vld [vmem:[#allocation5 + $0x24] sm:$0xf]
        %v738 = vld [vmem:[#allocation5 + $0x28] sm:$0xf]
        %v739 = vld [vmem:[#allocation5 + $0x2c] sm:$0xf]
        %v740 = vld [vmem:[#allocation5 + $0x30] sm:$0xf]
        %v741 = vld [vmem:[#allocation5 + $0x34] sm:$0xf]
        %v742 = vld [vmem:[#allocation5 + $0x38] sm:$0xf]
        %v743 = vld [vmem:[#allocation5 + $0x3c] sm:$0xf]
        %v744 = vld [vmem:[#allocation3] sm:$0xf]
        %v745 = vld [vmem:[#allocation3 + $0x4] sm:$0xf]
        %v746 = vld [vmem:[#allocation3 + $0x8] sm:$0xf]
        %v747 = vld [vmem:[#allocation3 + $0xc] sm:$0xf]
        %v748 = vld [vmem:[#allocation3 + $0x10] sm:$0xf]
        %v749 = vld [vmem:[#allocation3 + $0x14] sm:$0xf]
        %v750 = vld [vmem:[#allocation3 + $0x18] sm:$0xf]
        %v751 = vld [vmem:[#allocation3 + $0x1c] sm:$0xf]
        %v752 = vld [vmem:[#allocation3 + $0x20] sm:$0xf]
        %v753 = vld [vmem:[#allocation3 + $0x24] sm:$0xf]
        %v754 = vld [vmem:[#allocation3 + $0x28] sm:$0xf]
        %v755 = vld [vmem:[#allocation3 + $0x2c] sm:$0xf]
        %v756 = vld [vmem:[#allocation3 + $0x30] sm:$0xf]
        %v757 = vld [vmem:[#allocation3 + $0x34] sm:$0xf]
        %v758 = vld [vmem:[#allocation3 + $0x38] sm:$0xf]
        %v759 = vld [vmem:[#allocation3 + $0x3c] sm:$0xf]
        %s760 = scalar_lea.vmem [#allocation4], %s727
        %v761 = vld [vmem:[%s760] sm:$0xff]
        %v762 = vld [vmem:[%s760 + $0x8] sm:$0xff]
        %v763 = vld [vmem:[%s760 + $0x10] sm:$0xff]
        %v764 = vld [vmem:[%s760 + $0x18] sm:$0xff]
        %v765 = vld [vmem:[%s760 + $0x20] sm:$0xff]
        %v766 = vld [vmem:[%s760 + $0x28] sm:$0xff]
        %v767 = vld [vmem:[%s760 + $0x30] sm:$0xff]
        %v768 = vld [vmem:[%s760 + $0x38] sm:$0xff]
        %v769 = vld [vmem:[%s760 + $0x40] sm:$0xff]
        %v770 = vld [vmem:[%s760 + $0x48] sm:$0xff]
        %v771 = vld [vmem:[%s760 + $0x50] sm:$0xff]
        %v772 = vld [vmem:[%s760 + $0x58] sm:$0xff]
        %v773 = vld [vmem:[%s760 + $0x60] sm:$0xff]
        %v774 = vld [vmem:[%s760 + $0x68] sm:$0xff]
        %v775 = vld [vmem:[%s760 + $0x70] sm:$0xff]
        %v776 = vld [vmem:[%s760 + $0x78] sm:$0xff]
        %v793 = vunpack.c.l.b16 %v728
        %v794 = vunpack.c.l.b16 %v729
        %v795 = vunpack.c.l.b16 %v730
        %v796 = vunpack.c.l.b16 %v731
        %v797 = vunpack.c.l.b16 %v732
        %v798 = vunpack.c.l.b16 %v733
        %v799 = vunpack.c.l.b16 %v734
        %v800 = vunpack.c.l.b16 %v735
        %v801 = vunpack.c.l.b16 %v736
        %v802 = vunpack.c.l.b16 %v737
        %v803 = vunpack.c.l.b16 %v738
        %v804 = vunpack.c.l.b16 %v739
        %v805 = vunpack.c.l.b16 %v740
        %v806 = vunpack.c.l.b16 %v741
        %v807 = vunpack.c.l.b16 %v742
        %v808 = vunpack.c.l.b16 %v743
        %v809 = vpack.c.b16 %v794, %v793
        %v810 = vpack.c.b16 %v796, %v795
        %v811 = vpack.c.b16 %v798, %v797
        %v812 = vpack.c.b16 %v800, %v799
        %v813 = vpack.c.b16 %v802, %v801
        %v814 = vpack.c.b16 %v804, %v803
        %v815 = vpack.c.b16 %v806, %v805
        %v816 = vpack.c.b16 %v808, %v807
        %v841 = vunpack.c.l.b16 %v744
        %v842 = vunpack.c.l.b16 %v745
        %v843 = vunpack.c.l.b16 %v746
        %v844 = vunpack.c.l.b16 %v747
        %v845 = vunpack.c.l.b16 %v748
        %v846 = vunpack.c.l.b16 %v749
        %v847 = vunpack.c.l.b16 %v750
        %v848 = vunpack.c.l.b16 %v751
        %v849 = vunpack.c.l.b16 %v752
        %v850 = vunpack.c.l.b16 %v753
        %v851 = vunpack.c.l.b16 %v754
        %v852 = vunpack.c.l.b16 %v755
        %v853 = vunpack.c.l.b16 %v756
        %v854 = vunpack.c.l.b16 %v757
        %v855 = vunpack.c.l.b16 %v758
        %v856 = vunpack.c.l.b16 %v759
        %v857 = vpack.c.b16 %v842, %v841
        %v858 = vpack.c.b16 %v844, %v843
        %v859 = vpack.c.b16 %v846, %v845
        %v860 = vpack.c.b16 %v848, %v847
        %v861 = vpack.c.b16 %v850, %v849
        %v862 = vpack.c.b16 %v852, %v851
        %v863 = vpack.c.b16 %v854, %v853
        %v864 = vpack.c.b16 %v856, %v855
        %873 = vmatpush.bf16.msra.mxu0 %v864
        %874 = vmatpush.bf16.msra.mxu0 %v863
        %875 = vmatpush.bf16.msra.mxu0 %v862
        %876 = vmatpush.bf16.msra.mxu0 %v861
        %877 = vmatpush.bf16.msra.mxu0 %v860
        %878 = vmatpush.bf16.msra.mxu0 %v859
        %879 = vmatpush.bf16.msra.mxu0 %v858
        %880 = vmatpush.bf16.msra.mxu0 %v857
        %881 = vmatmul.bf16.gmra.mxu0 %v809
        %v882 = vpop.f32.mrf.mxu0
        %v883 = vadd.f32 %v761, %v882
        %v884 = vpop.f32.mrf.mxu0
        %v885 = vadd.f32 %v762, %v884
        %886 = vmatmul.bf16.gmra.mxu0 %v810
        %v887 = vpop.f32.mrf.mxu0
        %v888 = vadd.f32 %v763, %v887
        %v889 = vpop.f32.mrf.mxu0
        %v890 = vadd.f32 %v764, %v889
        %891 = vmatmul.bf16.gmra.mxu0 %v811
        %v892 = vpop.f32.mrf.mxu0
        %v893 = vadd.f32 %v765, %v892
        %v894 = vpop.f32.mrf.mxu0
        %v895 = vadd.f32 %v766, %v894
        %896 = vmatmul.bf16.gmra.mxu0 %v812
        %v897 = vpop.f32.mrf.mxu0
        %v898 = vadd.f32 %v767, %v897
        %v899 = vpop.f32.mrf.mxu0
        %v900 = vadd.f32 %v768, %v899
        %901 = vmatmul.bf16.gmra.mxu0 %v813
        %v902 = vpop.f32.mrf.mxu0
        %v903 = vadd.f32 %v769, %v902
        %v904 = vpop.f32.mrf.mxu0
        %v905 = vadd.f32 %v770, %v904
        %906 = vmatmul.bf16.gmra.mxu0 %v814
        %v907 = vpop.f32.mrf.mxu0
        %v908 = vadd.f32 %v771, %v907
        %v909 = vpop.f32.mrf.mxu0
        %v910 = vadd.f32 %v772, %v909
        %911 = vmatmul.bf16.gmra.mxu0 %v815
        %v912 = vpop.f32.mrf.mxu0
        %v913 = vadd.f32 %v773, %v912
        %v914 = vpop.f32.mrf.mxu0
        %v915 = vadd.f32 %v774, %v914
        %916 = vmatmul.bf16.gmra.mxu0 %v816
        %v917 = vpop.f32.mrf.mxu0
        %v918 = vadd.f32 %v775, %v917
        %v919 = vpop.f32.mrf.mxu0
        %v920 = vadd.f32 %v776, %v919
        %921 = vdwg.mxu0
        %p922 = scmp.lt.s32.totalorder %s23, 2
        // Predicated region
        $region65: #{tpu_custom_call.1} parent=39 // pred_check
          %p923 = pneg %p922
        $region66: #{tpu_custom_call.1} parent=39 // pred_check_branch
          %925 = sbr.rel (%p923) target = $region68
        $region67: #{tpu_custom_call.1} parent=39 // pred_region
          %v926 = vmax.f32 %v883, 0.0
          %v927 = vmax.f32 %v885, 0.0
          %v928 = vmax.f32 %v888, 0.0
          %v929 = vmax.f32 %v890, 0.0
          %v930 = vmax.f32 %v893, 0.0
          %v931 = vmax.f32 %v895, 0.0
          %v932 = vmax.f32 %v898, 0.0
          %v933 = vmax.f32 %v900, 0.0
          %v934 = vmax.f32 %v903, 0.0
          %v935 = vmax.f32 %v905, 0.0
          %v936 = vmax.f32 %v908, 0.0
          %v937 = vmax.f32 %v910, 0.0
          %v938 = vmax.f32 %v913, 0.0
          %v939 = vmax.f32 %v915, 0.0
          %v940 = vmax.f32 %v918, 0.0
          %v941 = vmax.f32 %v920, 0.0
          %v942 = vpack.c.bf16 %v926, %v926
          %v943 = vpack.c.bf16 %v927, %v927
          %v944 = vpack.c.bf16 %v928, %v928
          %v945 = vpack.c.bf16 %v929, %v929
          %v946 = vpack.c.bf16 %v930, %v930
          %v947 = vpack.c.bf16 %v931, %v931
          %v948 = vpack.c.bf16 %v932, %v932
          %v949 = vpack.c.bf16 %v933, %v933
          %v950 = vpack.c.bf16 %v934, %v934
          %v951 = vpack.c.bf16 %v935, %v935
          %v952 = vpack.c.bf16 %v936, %v936
          %v953 = vpack.c.bf16 %v937, %v937
          %v954 = vpack.c.bf16 %v938, %v938
          %v955 = vpack.c.bf16 %v939, %v939
          %v956 = vpack.c.bf16 %v940, %v940
          %v957 = vpack.c.bf16 %v941, %v941
          %s958 = sshra.s32 %s727, 3
          %s959 = sand.u32 %s727, 7
          %s960 = smul.addr %s958, 4
          %s961 = scalar_lea.vmem [#allocation2], %s960
          %962 = vst [vmem:[%s961] sm:$0xf] %v942
          %963 = vst [vmem:[%s961 + $0x4] sm:$0xf] %v943
          %964 = vst [vmem:[%s961 + $0x8] sm:$0xf] %v944
          %965 = vst [vmem:[%s961 + $0xc] sm:$0xf] %v945
          %966 = vst [vmem:[%s961 + $0x10] sm:$0xf] %v946
          %967 = vst [vmem:[%s961 + $0x14] sm:$0xf] %v947
          %968 = vst [vmem:[%s961 + $0x18] sm:$0xf] %v948
          %969 = vst [vmem:[%s961 + $0x1c] sm:$0xf] %v949
          %970 = vst [vmem:[%s961 + $0x20] sm:$0xf] %v950
          %971 = vst [vmem:[%s961 + $0x24] sm:$0xf] %v951
          %972 = vst [vmem:[%s961 + $0x28] sm:$0xf] %v952
          %973 = vst [vmem:[%s961 + $0x2c] sm:$0xf] %v953
          %974 = vst [vmem:[%s961 + $0x30] sm:$0xf] %v954
          %975 = vst [vmem:[%s961 + $0x34] sm:$0xf] %v955
          %976 = vst [vmem:[%s961 + $0x38] sm:$0xf] %v956
          %977 = vst [vmem:[%s961 + $0x3c] sm:$0xf] %v957
        $region68: #{tpu_custom_call.1} parent=39 // pred_fallthru
          _
        %p978 = scmp.eq.s32.totalorder %s23, 2
        // Predicated region
        $region69: #{tpu_custom_call.1} parent=39 // pred_check
          %p979 = pneg %p978
        $region70: #{tpu_custom_call.1} parent=39 // pred_check_branch
          %981 = sbr.rel (%p979) target = $region72
        $region71: #{tpu_custom_call.1} parent=39 // pred_region
          %v982 = vlaneseq
          %v983 = vand.u32 %v982, 127
          %vm984 = vcmp.lt.s32.totalorder %v983, 2
          %v985 = vsel %vm984, %v883, -1e+30
          %v986 = vsel %vm984, %v885, -1e+30
          %v987 = vsel %vm984, %v888, -1e+30
          %v988 = vsel %vm984, %v890, -1e+30
          %v989 = vsel %vm984, %v893, -1e+30
          %v990 = vsel %vm984, %v895, -1e+30
          %v991 = vsel %vm984, %v898, -1e+30
          %v992 = vsel %vm984, %v900, -1e+30
          %v993 = vsel %vm984, %v903, -1e+30
          %v994 = vsel %vm984, %v905, -1e+30
          %v995 = vsel %vm984, %v908, -1e+30
          %v996 = vsel %vm984, %v910, -1e+30
          %v997 = vsel %vm984, %v913, -1e+30
          %v998 = vsel %vm984, %v915, -1e+30
          %v999 = vsel %vm984, %v918, -1e+30
          %v1000 = vsel %vm984, %v920, -1e+30
          %1001 = vmax.xlane.f32.xlu0 %v985
          %v1002 = vpop.xlane.xlu0 %1001
          %1003 = vmax.xlane.f32.xlu0 %v986
          %v1004 = vpop.xlane.xlu0 %1003
          %1005 = vmax.xlane.f32.xlu0 %v987
          %v1006 = vpop.xlane.xlu0 %1005
          %1007 = vmax.xlane.f32.xlu0 %v988
          %v1008 = vpop.xlane.xlu0 %1007
          %1009 = vmax.xlane.f32.xlu0 %v989
          %v1010 = vpop.xlane.xlu0 %1009
          %1011 = vmax.xlane.f32.xlu0 %v990
          %v1012 = vpop.xlane.xlu0 %1011
          %1013 = vmax.xlane.f32.xlu0 %v991
          %v1014 = vpop.xlane.xlu0 %1013
          %1015 = vmax.xlane.f32.xlu0 %v992
          %v1016 = vpop.xlane.xlu0 %1015
          %1017 = vmax.xlane.f32.xlu0 %v993
          %v1018 = vpop.xlane.xlu0 %1017
          %1019 = vmax.xlane.f32.xlu0 %v994
          %v1020 = vpop.xlane.xlu0 %1019
          %1021 = vmax.xlane.f32.xlu0 %v995
          %v1022 = vpop.xlane.xlu0 %1021
          %1023 = vmax.xlane.f32.xlu0 %v996
          %v1024 = vpop.xlane.xlu0 %1023
          %1025 = vmax.xlane.f32.xlu0 %v997
          %v1026 = vpop.xlane.xlu0 %1025
          %1027 = vmax.xlane.f32.xlu0 %v998
          %v1028 = vpop.xlane.xlu0 %1027
          %1029 = vmax.xlane.f32.xlu0 %v999
          %v1030 = vpop.xlane.xlu0 %1029
          %1031 = vmax.xlane.f32.xlu0 %v1000
          %v1032 = vpop.xlane.xlu0 %1031
          %v1033 = vsub.f32 %v985, %v1002
          %v1034 = vsub.f32 %v986, %v1004
          %v1035 = vsub.f32 %v987, %v1006
          %v1036 = vsub.f32 %v988, %v1008
          %v1037 = vsub.f32 %v989, %v1010
          %v1038 = vsub.f32 %v990, %v1012
          %v1039 = vsub.f32 %v991, %v1014
          %v1040 = vsub.f32 %v992, %v1016
          %v1041 = vsub.f32 %v993, %v1018
          %v1042 = vsub.f32 %v994, %v1020
          %v1043 = vsub.f32 %v995, %v1022
          %v1044 = vsub.f32 %v996, %v1024
          %v1045 = vsub.f32 %v997, %v1026
          %v1046 = vsub.f32 %v998, %v1028
          %v1047 = vsub.f32 %v999, %v1030
          %v1048 = vsub.f32 %v1000, %v1032
          %v1049 = vmul.f32 %v1033, 1.442695
          %v1050 = vpow.pop %v1049
          %v1051 = vmul.f32 %v1034, 1.442695
          %v1052 = vpow.pop %v1051
          %v1053 = vmul.f32 %v1035, 1.442695
          %v1054 = vpow.pop %v1053
          %v1055 = vmul.f32 %v1036, 1.442695
          %v1056 = vpow.pop %v1055
          %v1057 = vmul.f32 %v1037, 1.442695
          %v1058 = vpow.pop %v1057
          %v1059 = vmul.f32 %v1038, 1.442695
          %v1060 = vpow.pop %v1059
          %v1061 = vmul.f32 %v1039, 1.442695
          %v1062 = vpow.pop %v1061
          %v1063 = vmul.f32 %v1040, 1.442695
          %v1064 = vpow.pop %v1063
          %v1065 = vmul.f32 %v1041, 1.442695
          %v1066 = vpow.pop %v1065
          %v1067 = vmul.f32 %v1042, 1.442695
          %v1068 = vpow.pop %v1067
          %v1069 = vmul.f32 %v1043, 1.442695
          %v1070 = vpow.pop %v1069
          %v1071 = vmul.f32 %v1044, 1.442695
          %v1072 = vpow.pop %v1071
          %v1073 = vmul.f32 %v1045, 1.442695
          %v1074 = vpow.pop %v1073
          %v1075 = vmul.f32 %v1046, 1.442695
          %v1076 = vpow.pop %v1075
          %v1077 = vmul.f32 %v1047, 1.442695
          %v1078 = vpow.pop %v1077
          %v1079 = vmul.f32 %v1048, 1.442695
          %v1080 = vpow.pop %v1079
          %1081 = vadd.xlane.f32.xlu0 %v1050
          %v1082 = vpop.xlane.xlu0 %1081
          %1083 = vadd.xlane.f32.xlu0 %v1052
          %v1084 = vpop.xlane.xlu0 %1083
          %1085 = vadd.xlane.f32.xlu0 %v1054
          %v1086 = vpop.xlane.xlu0 %1085
          %1087 = vadd.xlane.f32.xlu0 %v1056
          %v1088 = vpop.xlane.xlu0 %1087
          %1089 = vadd.xlane.f32.xlu0 %v1058
          %v1090 = vpop.xlane.xlu0 %1089
          %1091 = vadd.xlane.f32.xlu0 %v1060
          %v1092 = vpop.xlane.xlu0 %1091
          %1093 = vadd.xlane.f32.xlu0 %v1062
          %v1094 = vpop.xlane.xlu0 %1093
          %1095 = vadd.xlane.f32.xlu0 %v1064
          %v1096 = vpop.xlane.xlu0 %1095
          %1097 = vadd.xlane.f32.xlu0 %v1066
          %v1098 = vpop.xlane.xlu0 %1097
          %1099 = vadd.xlane.f32.xlu0 %v1068
          %v1100 = vpop.xlane.xlu0 %1099
          %1101 = vadd.xlane.f32.xlu0 %v1070
          %v1102 = vpop.xlane.xlu0 %1101
          %1103 = vadd.xlane.f32.xlu0 %v1072
          %v1104 = vpop.xlane.xlu0 %1103
          %1105 = vadd.xlane.f32.xlu0 %v1074
          %v1106 = vpop.xlane.xlu0 %1105
          %1107 = vadd.xlane.f32.xlu0 %v1076
          %v1108 = vpop.xlane.xlu0 %1107
          %1109 = vadd.xlane.f32.xlu0 %v1078
          %v1110 = vpop.xlane.xlu0 %1109
          %1111 = vadd.xlane.f32.xlu0 %v1080
          %v1112 = vpop.xlane.xlu0 %1111
          %v1113 = vlog2.pop %v1082
          %v1114 = vmul.f32 %v1113, 0.6931472
          %v1115 = vlog2.pop %v1084
          %v1116 = vmul.f32 %v1115, 0.6931472
          %v1117 = vlog2.pop %v1086
          %v1118 = vmul.f32 %v1117, 0.6931472
          %v1119 = vlog2.pop %v1088
          %v1120 = vmul.f32 %v1119, 0.6931472
          %v1121 = vlog2.pop %v1090
          %v1122 = vmul.f32 %v1121, 0.6931472
          %v1123 = vlog2.pop %v1092
          %v1124 = vmul.f32 %v1123, 0.6931472
          %v1125 = vlog2.pop %v1094
          %v1126 = vmul.f32 %v1125, 0.6931472
          %v1127 = vlog2.pop %v1096
          %v1128 = vmul.f32 %v1127, 0.6931472
          %v1129 = vlog2.pop %v1098
          %v1130 = vmul.f32 %v1129, 0.6931472
          %v1131 = vlog2.pop %v1100
          %v1132 = vmul.f32 %v1131, 0.6931472
          %v1133 = vlog2.pop %v1102
          %v1134 = vmul.f32 %v1133, 0.6931472
          %v1135 = vlog2.pop %v1104
          %v1136 = vmul.f32 %v1135, 0.6931472
          %v1137 = vlog2.pop %v1106
          %v1138 = vmul.f32 %v1137, 0.6931472
          %v1139 = vlog2.pop %v1108
          %v1140 = vmul.f32 %v1139, 0.6931472
          %v1141 = vlog2.pop %v1110
          %v1142 = vmul.f32 %v1141, 0.6931472
          %v1143 = vlog2.pop %v1112
          %v1144 = vmul.f32 %v1143, 0.6931472
          %v1145 = vsub.f32 %v1033, %v1114
          %v1146 = vsub.f32 %v1034, %v1116
          %v1147 = vsub.f32 %v1035, %v1118
          %v1148 = vsub.f32 %v1036, %v1120
          %v1149 = vsub.f32 %v1037, %v1122
          %v1150 = vsub.f32 %v1038, %v1124
          %v1151 = vsub.f32 %v1039, %v1126
          %v1152 = vsub.f32 %v1040, %v1128
          %v1153 = vsub.f32 %v1041, %v1130
          %v1154 = vsub.f32 %v1042, %v1132
          %v1155 = vsub.f32 %v1043, %v1134
          %v1156 = vsub.f32 %v1044, %v1136
          %v1157 = vsub.f32 %v1045, %v1138
          %v1158 = vsub.f32 %v1046, %v1140
          %v1159 = vsub.f32 %v1047, %v1142
          %v1160 = vsub.f32 %v1048, %v1144
          %1161 = vst [vmem:[#allocation12] sm:$0xff] %v1145
          %1162 = vst [vmem:[#allocation12 + $0x8] sm:$0xff] %v1146
          %1163 = vst [vmem:[#allocation12 + $0x10] sm:$0xff] %v1147
          %1164 = vst [vmem:[#allocation12 + $0x18] sm:$0xff] %v1148
          %1165 = vst [vmem:[#allocation12 + $0x20] sm:$0xff] %v1149
          %1166 = vst [vmem:[#allocation12 + $0x28] sm:$0xff] %v1150
          %1167 = vst [vmem:[#allocation12 + $0x30] sm:$0xff] %v1151
          %1168 = vst [vmem:[#allocation12 + $0x38] sm:$0xff] %v1152
          %1169 = vst [vmem:[#allocation12 + $0x40] sm:$0xff] %v1153
          %1170 = vst [vmem:[#allocation12 + $0x48] sm:$0xff] %v1154
          %1171 = vst [vmem:[#allocation12 + $0x50] sm:$0xff] %v1155
          %1172 = vst [vmem:[#allocation12 + $0x58] sm:$0xff] %v1156
          %1173 = vst [vmem:[#allocation12 + $0x60] sm:$0xff] %v1157
          %1174 = vst [vmem:[#allocation12 + $0x68] sm:$0xff] %v1158
          %1175 = vst [vmem:[#allocation12 + $0x70] sm:$0xff] %v1159
          %1176 = vst [vmem:[#allocation12 + $0x78] sm:$0xff] %v1160
        $region72: #{tpu_custom_call.1} parent=39 // pred_fallthru
          _
        // Predicated region
        $region73: #{tpu_custom_call.1} parent=39 // pred_check
          %p1177 = pneg %p174
        $region74: #{tpu_custom_call.1} parent=39 // pred_check_branch
          %1179 = sbr.rel (%p1177) target = $region76
        $region75: #{tpu_custom_call.1} parent=39 // pred_region
          %s1180 = smul.u32 16, %s24
          %1182 = vsyncadd [#allocation7], 0
          %s1183 = smul.addr %s1180, 8
          %s1184 = scalar_lea.hbm %s5, %s1183
          %s1185 = sshll.u32 [#allocation12], 4
          %s1186 = int_to_ptr.vmem [resolvable:$true] %s1185
          %s1187 = sshll.u32 %s1184, 4
          %s1188 = int_to_ptr.hbm [resolvable:$true] %s1187
          %1193 = dma.vmem_to_hbm [thread:$0]  %s1186, 2048, %s1188, [#allocation7], 128, 128, 8
        $region76: #{tpu_custom_call.1} parent=39 // pred_fallthru
          _
        // Predicated region
        $region77: #{tpu_custom_call.1} parent=39 // pred_check
          %p1194 = pneg %p174
        $region78: #{tpu_custom_call.1} parent=39 // pred_check_branch
          %1196 = sbr.rel (%p1194) target = $region80
        $region79: #{tpu_custom_call.1} parent=39 // pred_region
          %1198 = dma.done [#allocation7], 2048
        $region80: #{tpu_custom_call.1} parent=39 // pred_fallthru
          _
      $region40: #{tpu_custom_call.1} parent=5 // pred_fallthru
        _
      %p1199 = scmp.le.s32.totalorder 2, %s14
      // Predicated region
      $region81: #{tpu_custom_call.1} parent=5 // pred_check
        %p1200 = pneg %p1199
      $region82: #{tpu_custom_call.1} parent=5 // pred_check_branch
        %1202 = sbr.rel (%p1200) target = $region84
      $region83: #{tpu_custom_call.1} parent=5 // pred_region
        %s1203 = ssub.s32 %s14, 2
      $region84: #{tpu_custom_call.1} parent=5 // pred_fallthru
        _
    $region6: #{tpu_custom_call.1} parent=1 // loop_footer
      %s18 = sadd.s32 1, %s14
    $region7: #{tpu_custom_call.1} parent=1 // loop_footer_branch
      %13 = sbr.rel target = $region3
    $region8: #{tpu_custom_call.1} parent=1 // loop_exit
      _
    %1204 = vsyncpa [#allocation6], 1
    %s1205 = scalar_lea.sflag [#allocation6], 1
    %1206 = vsyncpa %s1205, 1
    %1207 = vsyncpa [#allocation9], 1
    %1208 = vsyncpa [#allocation7], 1
    %s1209 = scalar_lea.sflag [#allocation7], 1
    %1210 = vsyncpa %s1209, 1

</llo_original>
